<compile_context>
chip_gen: v6e
topology: v6e:2x2x1
jax: 0.10.0
libtpu: 0.0.40
codegen_flags: <defaults>
</compile_context>

<pallas_src>
import functools

import jax
import jax.numpy as jnp
from jax.experimental import pallas as pl
from jax.experimental.pallas import tpu as pltpu


def _round_up(a, b):
    return (a + b - 1) // b * b


def _pick_tile(n_pad, candidates):
    for t in candidates:
        if t <= n_pad and n_pad % t == 0:
            return t
    return 128  # n_pad is always a multiple of 128


# ---------------------------------------------------------------------------
# Kernel 1: support = X @ W + b   (row-tiled, bf16 inputs, f32 MXU accumulate)
# ---------------------------------------------------------------------------
def _support_kernel(x_ref, w_ref, b_ref, o_ref):
    s = jnp.dot(x_ref[...], w_ref[...], preferred_element_type=jnp.float32)
    o_ref[...] = (s + b_ref[...]).astype(o_ref.dtype)


# ---------------------------------------------------------------------------
# Kernel 2: y = log_softmax(Â @ support)
#   grid = (row tiles, K tiles); f32 VMEM accumulator; support either fully
#   VMEM-resident (sliced with pl.ds per K step) or streamed per K tile.
# ---------------------------------------------------------------------------
def _prop_kernel(adj_ref, sup_ref, o_ref, acc_ref, *, n_classes, tile_k, resident):
    k = pl.program_id(1)

    @pl.when(k == 0)
    def _():
        acc_ref[...] = jnp.zeros_like(acc_ref)

    if resident:
        start = pl.multiple_of(k * tile_k, tile_k)
        sup = sup_ref[pl.ds(start, tile_k), :]
    else:
        sup = sup_ref[...]

    acc_ref[...] += jnp.dot(adj_ref[...], sup,
                            preferred_element_type=jnp.float32)

    @pl.when(k == pl.num_programs(1) - 1)
    def _():
        logits = acc_ref[...]
        # mask the zero-padded class lanes out of the softmax reduction
        lane = jax.lax.broadcasted_iota(jnp.int32, logits.shape, 1)
        valid = lane < n_classes
        m = jnp.max(jnp.where(valid, logits, -jnp.inf), axis=1, keepdims=True)
        shifted = logits - m
        lse = jnp.log(jnp.sum(jnp.where(valid, jnp.exp(shifted), 0.0),
                              axis=1, keepdims=True))
        o_ref[...] = (shifted - lse).astype(o_ref.dtype)


def gcn_forward(x, adj, weight, bias, *, compute_dtype=jnp.bfloat16):
    """Â is the dense normalized adjacency [N, N]; returns log-probs [N, C]."""
    n, f = x.shape
    c = weight.shape[1]

    # padding: 128 granularity on nodes / features, lane-dense 128 classes
    n_pad = _round_up(n, 128)
    f_pad = _round_up(f, 128)
    c_pad = _round_up(c, 128)

    # decoupled tiles that divide n_pad; large K tile amortizes per-step
    # overhead; >=2 row tiles when possible (v7x megacore)
    tile_m = _pick_tile(n_pad, (512, 256, 128))
    if n_pad == tile_m and tile_m >= 256:
        tile_m //= 2
    tile_k = _pick_tile(n_pad, (2048, 1024, 512, 256, 128))

    n_row_tiles = n_pad // tile_m
    n_k_tiles = n_pad // tile_k

    # cast BEFORE padding so the wrapper never does a full f32 N^2 pass
    x_p = jnp.pad(x.astype(compute_dtype), ((0, n_pad - n), (0, f_pad - f)))
    adj_p = jnp.pad(adj.astype(compute_dtype), ((0, n_pad - n), (0, n_pad - n)))
    w_p = jnp.pad(weight.astype(compute_dtype), ((0, f_pad - f), (0, c_pad - c)))
    b_p = jnp.pad(bias.reshape(1, -1).astype(jnp.float32),
                  ((0, 0), (0, c_pad - c)))

    # --- support = X @ W + b : computed once, bf16 out, padded classes ---
    support = pl.pallas_call(
        _support_kernel,
        out_shape=jax.ShapeDtypeStruct((n_pad, c_pad), compute_dtype),
        grid=(n_row_tiles,),
        in_specs=[
            pl.BlockSpec((tile_m, f_pad), lambda i: (i, 0)),
            pl.BlockSpec((f_pad, c_pad), lambda i: (0, 0)),
            pl.BlockSpec((1, c_pad), lambda i: (0, 0)),
        ],
        out_specs=pl.BlockSpec((tile_m, c_pad), lambda i: (i, 0)),
        compiler_params=pltpu.CompilerParams(
            dimension_semantics=("parallel",)),
    )(x_p, w_p, b_p)

    # support residency: keep whole [n_pad, c_pad] bf16 slab in VMEM unless it
    # would eat too much of the (v7x-sized) VMEM budget, then stream per K tile
    sup_resident_bytes = 2 * n_pad * c_pad * jnp.dtype(compute_dtype).itemsize
    resident = sup_resident_bytes <= 8 * 1024 * 1024

    if resident:
        sup_spec = pl.BlockSpec((n_pad, c_pad), lambda i, k: (0, 0))
        sup_vmem = sup_resident_bytes
    else:
        sup_spec = pl.BlockSpec((tile_k, c_pad), lambda i, k: (k, 0))
        sup_vmem = 2 * tile_k * c_pad * jnp.dtype(compute_dtype).itemsize

    vmem_est = (2 * tile_m * tile_k * jnp.dtype(compute_dtype).itemsize  # adj (dbl buf)
                + sup_vmem
                + 2 * tile_m * c_pad * 4                                 # out (dbl buf)
                + tile_m * c_pad * 4)                                    # acc scratch
    vmem_limit = int(min(max(2 * vmem_est, 16 * 1024 * 1024), 64 * 1024 * 1024))

    # --- out = log_softmax(Â @ support) : stream big Â tiles, accumulate f32 ---
    out_pad = pl.pallas_call(
        functools.partial(_prop_kernel, n_classes=c, tile_k=tile_k,
                          resident=resident),
        out_shape=jax.ShapeDtypeStruct((n_pad, c_pad), jnp.float32),
        grid=(n_row_tiles, n_k_tiles),
        in_specs=[
            pl.BlockSpec((tile_m, tile_k), lambda i, k: (i, k)),
            sup_spec,
        ],
        out_specs=pl.BlockSpec((tile_m, c_pad), lambda i, k: (i, 0)),
        scratch_shapes=[pltpu.VMEM((tile_m, c_pad), jnp.float32)],
        compiler_params=pltpu.CompilerParams(
            dimension_semantics=("parallel", "arbitrary"),
            vmem_limit_bytes=vmem_limit),
    )(adj_p, support)

    return out_pad[:n, :c]


def build_normalized_adj(edge_index, num_nodes):
    """Â = D^{-1/2} (A + I) D^{-1/2} as a dense [N, N] matrix (plain-JAX glue)."""
    src, dst = edge_index[0], edge_index[1]
    adj = jnp.zeros((num_nodes, num_nodes), dtype=jnp.float32)
    adj = adj.at[src, dst].set(1.0)
    adj = adj.at[dst, src].set(1.0)                       # symmetrize
    eye = jnp.eye(num_nodes, dtype=bool)
    adj = jnp.where(eye, 1.0, adj)                        # self loops, exactly once
    deg = jnp.sum(adj, axis=1)
    d_inv_sqrt = jnp.where(deg > 0, 1.0 / jnp.sqrt(deg), 0.0)
    return adj * d_inv_sqrt[:, None] * d_inv_sqrt[None, :]


if __name__ == "__main__":
    key = jax.random.PRNGKey(0)
    k_x, k_e, k_w = jax.random.split(key, 3)

    # Small shapes consistent with the module: N nodes, nfeat features, nclass classes.
    num_nodes, nfeat, nclass = 16, 32, 8
    num_edges = 40

    x = jax.random.normal(k_x, (num_nodes, nfeat), dtype=jnp.float32)
    edge_index = jax.random.randint(k_e, (2, num_edges), 0, num_nodes, dtype=jnp.int32)

    # Deterministic parameter init (Glorot-uniform-like weight, zero bias).
    limit = (6.0 / (nfeat + nclass)) ** 0.5
    weight = jax.random.uniform(k_w, (nfeat, nclass), minval=-limit, maxval=limit,
                                dtype=jnp.float32)
    bias = jnp.zeros((1, nclass), dtype=jnp.float32)

    # TODO(synk): dropout from GCN.__init__ is unused in this forward (eval path).
    adj = build_normalized_adj(edge_index, num_nodes)

    out = jax.block_until_ready(gcn_forward(x, adj, weight, bias))
    assert out.shape == (num_nodes, nclass)

    # Reference with the same bf16 quantization of X/W/Â/support, f32 accumulation.
    sup_ref = (jnp.dot(x.astype(jnp.bfloat16), weight.astype(jnp.bfloat16),
                       preferred_element_type=jnp.float32) + bias)
    sup_ref = sup_ref.astype(jnp.bfloat16).astype(jnp.float32)
    adj_bf = adj.astype(jnp.bfloat16).astype(jnp.float32)
    ref = jax.nn.log_softmax(adj_bf @ sup_ref, axis=1)
    err = float(jnp.max(jnp.abs(out - ref)))
    assert jnp.allclose(out, ref, atol=2e-2), f"mismatch vs reference: max err {err}"

    print("KERNEL_OK")
</pallas_src>

<mosaic_0001>
module attributes {stable_mosaic.version = 11 : i64} {
  func.func @_support_kernel(%arg0: i32, %arg1: memref<128x128xbf16, #tpu.memory_space<vmem>>, %arg2: memref<128x128xbf16, #tpu.memory_space<vmem>>, %arg3: memref<1x128xf32, #tpu.memory_space<vmem>>, %arg4: memref<128x128xbf16, #tpu.memory_space<vmem>>) attributes {dimension_semantics = [#tpu.dimension_semantics<parallel>], iteration_bounds = array<i64: 1>, scalar_prefetch = 0 : i64, scratch_operands = 0 : i64, tpu.core_type = #tpu.core_type<tc>, window_params = [{transform_indices = @transform_0, window_bounds = array<i64: 128, 128>}, {pipeline_mode = #tpu.pipeline_mode<synchronous>, transform_indices = @transform_1, window_bounds = array<i64: 128, 128>}, {pipeline_mode = #tpu.pipeline_mode<synchronous>, transform_indices = @transform_2, window_bounds = array<i64: 1, 128>}, {transform_indices = @transform_3, window_bounds = array<i64: 128, 128>}]} {
    %c0 = arith.constant 0 : index
    %c0_0 = arith.constant 0 : index
    %0 = vector.load %arg1[%c0, %c0_0] : memref<128x128xbf16, #tpu.memory_space<vmem>>, vector<128x128xbf16>
    %c0_1 = arith.constant 0 : index
    %c0_2 = arith.constant 0 : index
    %1 = vector.load %arg2[%c0_1, %c0_2] : memref<128x128xbf16, #tpu.memory_space<vmem>>, vector<128x128xbf16>
    %cst = arith.constant dense<0.000000e+00> : vector<128x128xf32>
    %2 = tpu.matmul %0, %1, %cst {dimension_numbers = #tpu.dot_dimension_numbers<[1], [0], [0], [1], [0, 0, 1, 1], [], []>} : vector<128x128xbf16>, vector<128x128xbf16>, vector<128x128xf32> -> vector<128x128xf32>
    %c0_3 = arith.constant 0 : index
    %c0_4 = arith.constant 0 : index
    %3 = vector.load %arg3[%c0_3, %c0_4] : memref<1x128xf32, #tpu.memory_space<vmem>>, vector<1x128xf32>
    %4 = vector.broadcast %3 : vector<1x128xf32> to vector<128x128xf32>
    %5 = arith.addf %2, %4 : vector<128x128xf32>
    %6 = arith.truncf %5 : vector<128x128xf32> to vector<128x128xbf16>
    %c0_5 = arith.constant 0 : index
    %c0_6 = arith.constant 0 : index
    %7 = vector.load %arg4[%c0_5, %c0_6] : memref<128x128xbf16, #tpu.memory_space<vmem>>, vector<128x128xbf16>
    tpu.vector_store %arg4[%c0_5, %c0_6], %6 {strides = array<i32>} : memref<128x128xbf16, #tpu.memory_space<vmem>>, vector<128x128xbf16>,
    return
  }
  func.func @transform_0(%arg0: i32) -> (i32, i32) {
    %c0_i32 = arith.constant 0 : i32
    %c0_i32_0 = arith.constant 0 : i32
    return %arg0, %c0_i32 : i32, i32
  }
  func.func @transform_1(%arg0: i32) -> (i32, i32) {
    %c0_i32 = arith.constant 0 : i32
    %c0_i32_0 = arith.constant 0 : i32
    %c0_i32_1 = arith.constant 0 : i32
    return %c0_i32, %c0_i32_0 : i32, i32
  }
  func.func @transform_2(%arg0: i32) -> (i32, i32) {
    %c0_i32 = arith.constant 0 : i32
    %c0_i32_0 = arith.constant 0 : i32
    %c0_i32_1 = arith.constant 0 : i32
    return %c0_i32, %c0_i32_0 : i32, i32
  }
  func.func @transform_3(%arg0: i32) -> (i32, i32) {
    %c0_i32 = arith.constant 0 : i32
    %c0_i32_0 = arith.constant 0 : i32
    return %arg0, %c0_i32 : i32, i32
  }
}

</mosaic_0001>

<llo_original>
// kernel: tpu_custom_call.1
$region0: #{tpu_custom_call.1}
  #allocation0 [shape = 'u32[]', space=smem, size = 0x4, offset = 0x4, fixed_abs, tag = 'smem constant byte address 0x4 - core index']
  #allocation1 [shape = 'u32[144,128]{1,0:T(1,128)}', space=vmem, size = 0x12000, scoped, tag = 'internal scratch']
  %s0 = inlined_call_operand.hbm [shape: bf16[128,128], index: 0, kind: input, shape index: {}]
  %s1 = inlined_call_operand.hbm [shape: bf16[128,128], index: 1, kind: input, shape index: {}]
  %s2 = inlined_call_operand.vmem [shape: f32[1,128], index: 2, kind: input, shape index: {}]
  %s3 = inlined_call_operand.hbm [shape: bf16[128,128], index: 3, kind: output, shape index: {}]
  %s4 = sld [smem:[#allocation0]]
  $region30: #{tpu_custom_call.1} parent=0
    _
  %s6 = ssub.s32 1, %s4
  %s7 = scalar_select 0, %s6, %s4
  $region1: #{tpu_custom_call.1} parent=0
    #allocation2 [shape = 'u8[32768]{0}', space=vmem, size = 0x8000, scoped, tag = 'input window, operand 0, single buffered']
    #allocation3 [shape = 's32[1]{0}', space=sflag, size = 0x4, scoped, tag = 'scoped memory for tpu_custom_call.1']
    #allocation4 [shape = 's32[1]{0}', space=sflag, size = 0x4, scoped, tag = 'scoped memory for tpu_custom_call.1']
    #allocation5 [shape = 'u8[32768]{0}', space=vmem, size = 0x8000, scoped, tag = 'input window, operand 1, single buffered']
    #allocation6 [shape = 's32[1]{0}', space=sflag, size = 0x4, scoped, tag = 'scoped memory for tpu_custom_call.1']
    #allocation7 [shape = 'u8[32768]{0}', space=vmem, size = 0x8000, scoped, tag = 'output window, operand 0, single buffered']
    %8 = vsyncpa [#allocation3], 0
    %9 = vsyncpa [#allocation6], 0
    %10 = vsyncpa [#allocation4], 0
    // Predicated region
    $region2: #{tpu_custom_call.1} parent=1 // pred_check
      _
    $region3: #{tpu_custom_call.1} parent=1 // pred_check_branch
      %12 = sbr.rel (0) target = $region5
    $region4: #{tpu_custom_call.1} parent=1 // pred_region
      %s14 = ssub.s32 1024, 1024
      %15 = vsyncadd [#allocation3], %s14
      %s16 = sshll.u32 [#allocation2], 4
      %s17 = int_to_ptr.vmem [resolvable:$true] %s16
      %22 = dma.hbm_to_vmem [thread:$0]  %s0, 1024, %s17, [#allocation3], 64, 64, 4
    $region5: #{tpu_custom_call.1} parent=1 // pred_fallthru
      _
    // Predicated region
    $region6: #{tpu_custom_call.1} parent=1 // pred_check
      _
    $region7: #{tpu_custom_call.1} parent=1 // pred_check_branch
      %24 = sbr.rel (0) target = $region9
    $region8: #{tpu_custom_call.1} parent=1 // pred_region
      %s26 = ssub.s32 1024, 1024
      %27 = vsyncadd [#allocation6], %s26
      %s28 = sshll.u32 [#allocation5], 4
      %s29 = int_to_ptr.vmem [resolvable:$true] %s28
      %34 = dma.hbm_to_vmem [thread:$0]  %s1, 1024, %s29, [#allocation6], 64, 64, 4
    $region9: #{tpu_custom_call.1} parent=1 // pred_fallthru
      _
    // Predicated region
    $region10: #{tpu_custom_call.1} parent=1 // pred_check
      _
    $region11: #{tpu_custom_call.1} parent=1 // pred_check_branch
      %36 = sbr.rel (0) target = $region13
    $region12: #{tpu_custom_call.1} parent=1 // pred_region
      _
    $region13: #{tpu_custom_call.1} parent=1 // pred_fallthru
      _
    // Predicated region
    $region14: #{tpu_custom_call.1} parent=1 // pred_check
      _
    $region15: #{tpu_custom_call.1} parent=1 // pred_check_branch
      %38 = sbr.rel (0) target = $region17
    $region16: #{tpu_custom_call.1} parent=1 // pred_region
      %39 = dma.done [#allocation3], 1024
    $region17: #{tpu_custom_call.1} parent=1 // pred_fallthru
      _
    // Predicated region
    $region18: #{tpu_custom_call.1} parent=1 // pred_check
      _
    $region19: #{tpu_custom_call.1} parent=1 // pred_check_branch
      %41 = sbr.rel (0) target = $region21
    $region20: #{tpu_custom_call.1} parent=1 // pred_region
      %42 = dma.done [#allocation6], 1024
    $region21: #{tpu_custom_call.1} parent=1 // pred_fallthru
      _
    %v44 = vld [vmem:[#allocation2] sm:$0xf]
    %v45 = vld [vmem:[#allocation2 + $0x4] sm:$0xf]
    %v46 = vld [vmem:[#allocation2 + $0x8] sm:$0xf]
    %v47 = vld [vmem:[#allocation2 + $0xc] sm:$0xf]
    %v48 = vld [vmem:[#allocation2 + $0x10] sm:$0xf]
    %v49 = vld [vmem:[#allocation2 + $0x14] sm:$0xf]
    %v50 = vld [vmem:[#allocation2 + $0x18] sm:$0xf]
    %v51 = vld [vmem:[#allocation2 + $0x1c] sm:$0xf]
    %v52 = vld [vmem:[#allocation2 + $0x20] sm:$0xf]
    %v53 = vld [vmem:[#allocation2 + $0x24] sm:$0xf]
    %v54 = vld [vmem:[#allocation2 + $0x28] sm:$0xf]
    %v55 = vld [vmem:[#allocation2 + $0x2c] sm:$0xf]
    %v56 = vld [vmem:[#allocation2 + $0x30] sm:$0xf]
    %v57 = vld [vmem:[#allocation2 + $0x34] sm:$0xf]
    %v58 = vld [vmem:[#allocation2 + $0x38] sm:$0xf]
    %v59 = vld [vmem:[#allocation2 + $0x3c] sm:$0xf]
    %v60 = vld [vmem:[#allocation5] sm:$0xf]
    %v61 = vld [vmem:[#allocation5 + $0x4] sm:$0xf]
    %v62 = vld [vmem:[#allocation5 + $0x8] sm:$0xf]
    %v63 = vld [vmem:[#allocation5 + $0xc] sm:$0xf]
    %v64 = vld [vmem:[#allocation5 + $0x10] sm:$0xf]
    %v65 = vld [vmem:[#allocation5 + $0x14] sm:$0xf]
    %v66 = vld [vmem:[#allocation5 + $0x18] sm:$0xf]
    %v67 = vld [vmem:[#allocation5 + $0x1c] sm:$0xf]
    %v68 = vld [vmem:[#allocation5 + $0x20] sm:$0xf]
    %v69 = vld [vmem:[#allocation5 + $0x24] sm:$0xf]
    %v70 = vld [vmem:[#allocation5 + $0x28] sm:$0xf]
    %v71 = vld [vmem:[#allocation5 + $0x2c] sm:$0xf]
    %v72 = vld [vmem:[#allocation5 + $0x30] sm:$0xf]
    %v73 = vld [vmem:[#allocation5 + $0x34] sm:$0xf]
    %v74 = vld [vmem:[#allocation5 + $0x38] sm:$0xf]
    %v75 = vld [vmem:[#allocation5 + $0x3c] sm:$0xf]
    %v76 = vld [vmem:[%s2] sm:$0x1]
    %v78 = vlaneseq
    %v79 = vshrl.u32 %v78, 7
    %v80 = vsub.s32 0, %v79
    %v81 = vrot.slane %v76, %v80
    %v99 = vunpack.c.l.b16 %v44
    %v100 = vunpack.c.l.b16 %v45
    %v101 = vunpack.c.l.b16 %v46
    %v102 = vunpack.c.l.b16 %v47
    %v103 = vunpack.c.l.b16 %v48
    %v104 = vunpack.c.l.b16 %v49
    %v105 = vunpack.c.l.b16 %v50
    %v106 = vunpack.c.l.b16 %v51
    %v107 = vunpack.c.l.b16 %v52
    %v108 = vunpack.c.l.b16 %v53
    %v109 = vunpack.c.l.b16 %v54
    %v110 = vunpack.c.l.b16 %v55
    %v111 = vunpack.c.l.b16 %v56
    %v112 = vunpack.c.l.b16 %v57
    %v113 = vunpack.c.l.b16 %v58
    %v114 = vunpack.c.l.b16 %v59
    %v115 = vpack.c.b16 %v100, %v99
    %v116 = vpack.c.b16 %v102, %v101
    %v117 = vpack.c.b16 %v104, %v103
    %v118 = vpack.c.b16 %v106, %v105
    %v119 = vpack.c.b16 %v108, %v107
    %v120 = vpack.c.b16 %v110, %v109
    %v121 = vpack.c.b16 %v112, %v111
    %v122 = vpack.c.b16 %v114, %v113
    %v147 = vunpack.c.l.b16 %v60
    %v148 = vunpack.c.l.b16 %v61
    %v149 = vunpack.c.l.b16 %v62
    %v150 = vunpack.c.l.b16 %v63
    %v151 = vunpack.c.l.b16 %v64
    %v152 = vunpack.c.l.b16 %v65
    %v153 = vunpack.c.l.b16 %v66
    %v154 = vunpack.c.l.b16 %v67
    %v155 = vunpack.c.l.b16 %v68
    %v156 = vunpack.c.l.b16 %v69
    %v157 = vunpack.c.l.b16 %v70
    %v158 = vunpack.c.l.b16 %v71
    %v159 = vunpack.c.l.b16 %v72
    %v160 = vunpack.c.l.b16 %v73
    %v161 = vunpack.c.l.b16 %v74
    %v162 = vunpack.c.l.b16 %v75
    %v163 = vpack.c.b16 %v148, %v147
    %v164 = vpack.c.b16 %v150, %v149
    %v165 = vpack.c.b16 %v152, %v151
    %v166 = vpack.c.b16 %v154, %v153
    %v167 = vpack.c.b16 %v156, %v155
    %v168 = vpack.c.b16 %v158, %v157
    %v169 = vpack.c.b16 %v160, %v159
    %v170 = vpack.c.b16 %v162, %v161
    %179 = vmatprep.subr.bf16.mxu0 0
    %180 = vmatpush1.bf16.msra.mxu0 %v170
    %181 = vmatprep.subr.bf16.mxu0 0
    %182 = vmatpush1.bf16.msra.mxu0 %v169
    %183 = vmatprep.subr.bf16.mxu0 0
    %184 = vmatpush1.bf16.msra.mxu0 %v168
    %185 = vmatprep.subr.bf16.mxu0 0
    %186 = vmatpush1.bf16.msra.mxu0 %v167
    %187 = vmatprep.subr.bf16.mxu0 0
    %188 = vmatpush1.bf16.msra.mxu0 %v166
    %189 = vmatprep.subr.bf16.mxu0 0
    %190 = vmatpush1.bf16.msra.mxu0 %v165
    %191 = vmatprep.subr.bf16.mxu0 0
    %192 = vmatpush1.bf16.msra.mxu0 %v164
    %193 = vmatprep.subr.bf16.mxu0 0
    %194 = vmatpush1.bf16.msra.mxu0 %v163
    %195 = vmatprep.subr.bf16.mxu0 0
    %196 = vmatpush2.bf16.msra.mxu0 0
    %197 = vmatprep.subr.bf16.mxu0 0
    %198 = vmatpush2.bf16.msra.mxu0 0
    %199 = vmatprep.subr.bf16.mxu0 0
    %200 = vmatpush2.bf16.msra.mxu0 0
    %201 = vmatprep.subr.bf16.mxu0 0
    %202 = vmatpush2.bf16.msra.mxu0 0
    %203 = vmatprep.subr.bf16.mxu0 0
    %204 = vmatpush2.bf16.msra.mxu0 0
    %205 = vmatprep.subr.bf16.mxu0 0
    %206 = vmatpush2.bf16.msra.mxu0 0
    %207 = vmatprep.subr.bf16.mxu0 0
    %208 = vmatpush2.bf16.msra.mxu0 0
    %209 = vmatprep.subr.bf16.mxu0 0
    %210 = vmatpush2.bf16.msra.mxu0 0
    %211 = vmatprep.mubr.bf16.mxu0 0
    %212 = vmatmul.mubr.bf16.gmra.mxu0 %v115
    %v213 = vpop.f32.mrf.mxu0
    %v214 = vadd.f32 %v81, %v213
    %v215 = vpop.f32.mrf.mxu0
    %v216 = vpop.f32.mrf.mxu0
    %v217 = vadd.f32 %v81, %v216
    %v218 = vpop.f32.mrf.mxu0
    %219 = vmatprep.mubr.bf16.mxu0 0
    %220 = vmatmul.mubr.bf16.gmra.mxu0 %v116
    %v221 = vpop.f32.mrf.mxu0
    %v222 = vadd.f32 %v81, %v221
    %v223 = vpop.f32.mrf.mxu0
    %v224 = vpop.f32.mrf.mxu0
    %v225 = vadd.f32 %v81, %v224
    %v226 = vpop.f32.mrf.mxu0
    %227 = vmatprep.mubr.bf16.mxu0 0
    %228 = vmatmul.mubr.bf16.gmra.mxu0 %v117
    %v229 = vpop.f32.mrf.mxu0
    %v230 = vadd.f32 %v81, %v229
    %v231 = vpop.f32.mrf.mxu0
    %v232 = vpop.f32.mrf.mxu0
    %v233 = vadd.f32 %v81, %v232
    %v234 = vpop.f32.mrf.mxu0
    %235 = vmatprep.mubr.bf16.mxu0 0
    %236 = vmatmul.mubr.bf16.gmra.mxu0 %v118
    %v237 = vpop.f32.mrf.mxu0
    %v238 = vadd.f32 %v81, %v237
    %v239 = vpop.f32.mrf.mxu0
    %v240 = vpop.f32.mrf.mxu0
    %v241 = vadd.f32 %v81, %v240
    %v242 = vpop.f32.mrf.mxu0
    %243 = vmatprep.mubr.bf16.mxu0 0
    %244 = vmatmul.mubr.bf16.gmra.mxu0 %v119
    %v245 = vpop.f32.mrf.mxu0
    %v246 = vadd.f32 %v81, %v245
    %v247 = vpop.f32.mrf.mxu0
    %v248 = vpop.f32.mrf.mxu0
    %v249 = vadd.f32 %v81, %v248
    %v250 = vpop.f32.mrf.mxu0
    %251 = vmatprep.mubr.bf16.mxu0 0
    %252 = vmatmul.mubr.bf16.gmra.mxu0 %v120
    %v253 = vpop.f32.mrf.mxu0
    %v254 = vadd.f32 %v81, %v253
    %v255 = vpop.f32.mrf.mxu0
    %v256 = vpop.f32.mrf.mxu0
    %v257 = vadd.f32 %v81, %v256
    %v258 = vpop.f32.mrf.mxu0
    %259 = vmatprep.mubr.bf16.mxu0 0
    %260 = vmatmul.mubr.bf16.gmra.mxu0 %v121
    %v261 = vpop.f32.mrf.mxu0
    %v262 = vadd.f32 %v81, %v261
    %v263 = vpop.f32.mrf.mxu0
    %v264 = vpop.f32.mrf.mxu0
    %v265 = vadd.f32 %v81, %v264
    %v266 = vpop.f32.mrf.mxu0
    %267 = vmatprep.mubr.bf16.mxu0 0
    %268 = vmatmul.mubr.bf16.gmra.mxu0 %v122
    %v269 = vpop.f32.mrf.mxu0
    %v270 = vadd.f32 %v81, %v269
    %v271 = vpop.f32.mrf.mxu0
    %v272 = vpop.f32.mrf.mxu0
    %v273 = vadd.f32 %v81, %v272
    %v274 = vpop.f32.mrf.mxu0
    %275 = vdwg.mxu0
    %v276 = vpack.c.bf16 %v217, %v214
    %v277 = vpack.c.bf16 %v225, %v222
    %v278 = vpack.c.bf16 %v233, %v230
    %v279 = vpack.c.bf16 %v241, %v238
    %v280 = vpack.c.bf16 %v249, %v246
    %v281 = vpack.c.bf16 %v257, %v254
    %v282 = vpack.c.bf16 %v265, %v262
    %v283 = vpack.c.bf16 %v273, %v270
    %v292 = vunpack.c.l.b16 %v276
    %v293 = vunpack.c.h.b16 %v276
    %v294 = vunpack.c.l.b16 %v277
    %v295 = vunpack.c.h.b16 %v277
    %v296 = vunpack.c.l.b16 %v278
    %v297 = vunpack.c.h.b16 %v278
    %v298 = vunpack.c.l.b16 %v279
    %v299 = vunpack.c.h.b16 %v279
    %v300 = vunpack.c.l.b16 %v280
    %v301 = vunpack.c.h.b16 %v280
    %v302 = vunpack.c.l.b16 %v281
    %v303 = vunpack.c.h.b16 %v281
    %v304 = vunpack.c.l.b16 %v282
    %v305 = vunpack.c.h.b16 %v282
    %v306 = vunpack.c.l.b16 %v283
    %v307 = vunpack.c.h.b16 %v283
    %v308 = vpack.c.b16 %v292, %v292
    %v309 = vpack.c.b16 %v293, %v293
    %v310 = vpack.c.b16 %v294, %v294
    %v311 = vpack.c.b16 %v295, %v295
    %v312 = vpack.c.b16 %v296, %v296
    %v313 = vpack.c.b16 %v297, %v297
    %v314 = vpack.c.b16 %v298, %v298
    %v315 = vpack.c.b16 %v299, %v299
    %v316 = vpack.c.b16 %v300, %v300
    %v317 = vpack.c.b16 %v301, %v301
    %v318 = vpack.c.b16 %v302, %v302
    %v319 = vpack.c.b16 %v303, %v303
    %v320 = vpack.c.b16 %v304, %v304
    %v321 = vpack.c.b16 %v305, %v305
    %v322 = vpack.c.b16 %v306, %v306
    %v323 = vpack.c.b16 %v307, %v307
    %340 = vst [vmem:[#allocation7] sm:$0xf] %v308
    %341 = vst [vmem:[#allocation7 + $0x4] sm:$0xf] %v309
    %342 = vst [vmem:[#allocation7 + $0x8] sm:$0xf] %v310
    %343 = vst [vmem:[#allocation7 + $0xc] sm:$0xf] %v311
    %344 = vst [vmem:[#allocation7 + $0x10] sm:$0xf] %v312
    %345 = vst [vmem:[#allocation7 + $0x14] sm:$0xf] %v313
    %346 = vst [vmem:[#allocation7 + $0x18] sm:$0xf] %v314
    %347 = vst [vmem:[#allocation7 + $0x1c] sm:$0xf] %v315
    %348 = vst [vmem:[#allocation7 + $0x20] sm:$0xf] %v316
    %349 = vst [vmem:[#allocation7 + $0x24] sm:$0xf] %v317
    %350 = vst [vmem:[#allocation7 + $0x28] sm:$0xf] %v318
    %351 = vst [vmem:[#allocation7 + $0x2c] sm:$0xf] %v319
    %352 = vst [vmem:[#allocation7 + $0x30] sm:$0xf] %v320
    %353 = vst [vmem:[#allocation7 + $0x34] sm:$0xf] %v321
    %354 = vst [vmem:[#allocation7 + $0x38] sm:$0xf] %v322
    %355 = vst [vmem:[#allocation7 + $0x3c] sm:$0xf] %v323
    // Predicated region
    $region22: #{tpu_custom_call.1} parent=1 // pred_check
      _
    $region23: #{tpu_custom_call.1} parent=1 // pred_check_branch
      %357 = sbr.rel (0) target = $region25
    $region24: #{tpu_custom_call.1} parent=1 // pred_region
      %s359 = ssub.s32 1024, 1024
      %360 = vsyncadd [#allocation4], %s359
      %s361 = sshll.u32 [#allocation7], 4
      %s362 = int_to_ptr.vmem [resolvable:$true] %s361
      %367 = dma.vmem_to_hbm [thread:$0]  %s362, 1024, %s3, [#allocation4], 64, 64, 4
    $region25: #{tpu_custom_call.1} parent=1 // pred_fallthru
      _
    // Predicated region
    $region26: #{tpu_custom_call.1} parent=1 // pred_check
      _
    $region27: #{tpu_custom_call.1} parent=1 // pred_check_branch
      %369 = sbr.rel (0) target = $region29
    $region28: #{tpu_custom_call.1} parent=1 // pred_region
      %370 = dma.done [#allocation4], 1024
    $region29: #{tpu_custom_call.1} parent=1 // pred_fallthru
      _
    %371 = vsyncpa [#allocation3], 1
    %372 = vsyncpa [#allocation6], 1
    %373 = vsyncpa [#allocation4], 1

</llo_original>
